<compile_context>
chip_gen: v7x
topology: tpu7x:2x2x1
jax: 0.10.0
libtpu: 0.0.40
codegen_flags: <defaults>
</compile_context>

<pallas_src>
import functools

import jax
import jax.numpy as jnp
from jax.experimental import pallas as pl
from jax.experimental.pallas import tpu as pltpu


# Largest padded K kept as a single reduction block (no K grid axis).
_K_COLLAPSE_MAX = 2048
_TK_SPLIT = 1024  # K block size when dim_in is too large to collapse.


def _round_up(x, m):
    return ((x + m - 1) // m) * m


def _device_caps():
    """Generation-specific tile caps / VMEM limit (safe fallback ~ v7x)."""
    try:
        kind = jax.devices()[0].device_kind.lower()
    except Exception:
        kind = ""
    if "v6" in kind:
        # v6e: 918 TF/s vs ~1.4 TB/s needs ~1k output tiles to reach the ridge.
        return {"tm": 1024, "tn": 1024, "vmem": 96 * 2**20}
    if "v5 lite" in kind or "v5e" in kind or "v5litepod" in kind:
        return {"tm": 512, "tn": 512, "vmem": 96 * 2**20}
    # v7x / unknown: 64 MiB VMEM per TC, ~310 flop/B ridge -> 512 tiles.
    return {"tm": 512, "tn": 512, "vmem": 48 * 2**20}


def _geglu_kernel(x_ref, w_ref, b_ref, o_ref):
    # x_ref: (tm, Kp)  w_ref: (Kp, 2*tn) = [val_n | gate_n]  b_ref: (1, 2*tn)
    # o_ref: (tm, tn)
    acc = jnp.dot(x_ref[...], w_ref[...], preferred_element_type=jnp.float32)
    acc = acc + b_ref[...]
    tn = o_ref.shape[-1]
    # Slice at a 128-lane boundary (no relayout); sigmoid runs on the EUP slot.
    o_ref[...] = (acc[:, :tn] * jax.nn.sigmoid(acc[:, tn:])).astype(o_ref.dtype)


def _geglu_kernel_ksplit(x_ref, w_ref, b_ref, o_ref, acc_ref):
    # Fallback when dim_in is too large to keep the whole reduction resident.
    k = pl.program_id(2)

    @pl.when(k == 0)
    def _init():
        acc_ref[...] = jnp.zeros_like(acc_ref)

    acc_ref[...] += jnp.dot(x_ref[...], w_ref[...],
                            preferred_element_type=jnp.float32)

    @pl.when(k == pl.num_programs(2) - 1)
    def _finalize():
        acc = acc_ref[...] + b_ref[...]
        tn = o_ref.shape[-1]
        o_ref[...] = (acc[:, :tn] * jax.nn.sigmoid(acc[:, tn:])).astype(o_ref.dtype)


def prepare_geglu_params(weight, bias, dim_out, *, compute_dtype=jnp.bfloat16):
    """One-time parameter preprocessing (hoisted out of the per-call hot path).

    weight: (2*dim_out, dim_in) PyTorch nn.Linear layout; bias: (2*dim_out,).
    Transposes, casts, pads and interleaves so that output tile n reads a single
    contiguous (Kp, 2*tn) weight slab laid out as [val tile n | gate tile n].
    """
    dim_in = weight.shape[1]
    caps = _device_caps()

    if _round_up(dim_in, 128) <= _K_COLLAPSE_MAX:
        tk = _round_up(dim_in, 128)       # whole reduction in one block
    else:
        tk = _TK_SPLIT
    Kp = _round_up(dim_in, tk)
    tn = min(caps["tn"], _round_up(dim_out, 128))
    Np = _round_up(dim_out, tn)
    nv = Np // tn

    pad_k, pad_n = Kp - dim_in, Np - dim_out
    w_t = weight.T.astype(compute_dtype)                    # (dim_in, 2*dim_out)
    w_val = jnp.pad(w_t[:, :dim_out], ((0, pad_k), (0, pad_n)))
    w_gate = jnp.pad(w_t[:, dim_out:], ((0, pad_k), (0, pad_n)))
    # Interleave per-tn tile: cols [n*2tn : (n+1)*2tn] = [val tile n | gate tile n].
    w_fused = jnp.concatenate(
        [w_val.reshape(Kp, nv, 1, tn), w_gate.reshape(Kp, nv, 1, tn)], axis=2
    ).reshape(Kp, 2 * Np)

    b32 = bias.astype(jnp.float32)
    b_val = jnp.pad(b32[:dim_out], (0, pad_n))
    b_gate = jnp.pad(b32[dim_out:], (0, pad_n))
    b_fused = jnp.concatenate(
        [b_val.reshape(nv, 1, tn), b_gate.reshape(nv, 1, tn)], axis=1
    ).reshape(1, 2 * Np)

    return {
        "w": jax.device_put(w_fused),
        "b": jax.device_put(b_fused),
        "dim_in": dim_in,
        "dim_out": dim_out,
        "tn": tn,
        "tk": tk,
    }


@functools.partial(
    jax.jit, static_argnames=("dim_in", "dim_out", "tn", "tk", "out_dtype"))
def _geglu_apply(x, w_fused, b_fused, *, dim_in, dim_out, tn, tk, out_dtype):
    orig_shape = x.shape
    x2d = x.reshape(-1, dim_in)
    M = x2d.shape[0]
    Kp, two_np = w_fused.shape
    Np = two_np // 2
    nk = Kp // tk
    caps = _device_caps()
    compute_dtype = w_fused.dtype

    tm = min(caps["tm"], _round_up(M, 16))
    Mp = _round_up(M, tm)

    xc = x2d.astype(compute_dtype)
    if Mp != M or Kp != dim_in:
        # Only K zero-padding is needed for reduction correctness; M padding keeps
        # the (8,128)-aligned block. Both are skipped when shapes already align.
        xc = jnp.pad(xc, ((0, Mp - M), (0, Kp - dim_in)))

    # VMEM budget: double-buffered blocks (+ f32 accumulator on the split path).
    isz = jnp.dtype(compute_dtype).itemsize
    osz = jnp.dtype(out_dtype).itemsize
    blk = tm * tk * isz + tk * 2 * tn * isz + 2 * tn * 4 + tm * tn * osz
    est = 2 * blk + (tm * 2 * tn * 4 if nk > 1 else 0)
    vmem_limit = int(min(max(2 * est, 32 * 2**20), caps["vmem"]))

    if nk == 1:
        # N outer, M inner: weight block index (0, n) is constant across the M
        # sweep, so each fused weight slab is DMA'd once per N tile.
        grid = (Np // tn, Mp // tm)
        out2d = pl.pallas_call(
            _geglu_kernel,
            out_shape=jax.ShapeDtypeStruct((Mp, Np), out_dtype),
            grid_spec=pltpu.PrefetchScalarGridSpec(
                num_scalar_prefetch=0,
                grid=grid,
                in_specs=[
                    pl.BlockSpec((tm, Kp), lambda n, m: (m, 0)),
                    pl.BlockSpec((Kp, 2 * tn), lambda n, m: (0, n)),
                    pl.BlockSpec((1, 2 * tn), lambda n, m: (0, n)),
                ],
                out_specs=pl.BlockSpec((tm, tn), lambda n, m: (m, n)),
            ),
            compiler_params=pltpu.CompilerParams(
                dimension_semantics=("parallel", "parallel"),
                vmem_limit_bytes=vmem_limit,
            ),
        )(xc, w_fused, b_fused)
    else:
        grid = (Np // tn, Mp // tm, nk)
        out2d = pl.pallas_call(
            _geglu_kernel_ksplit,
            out_shape=jax.ShapeDtypeStruct((Mp, Np), out_dtype),
            grid_spec=pltpu.PrefetchScalarGridSpec(
                num_scalar_prefetch=0,
                grid=grid,
                in_specs=[
                    pl.BlockSpec((tm, tk), lambda n, m, k: (m, k)),
                    pl.BlockSpec((tk, 2 * tn), lambda n, m, k: (k, n)),
                    pl.BlockSpec((1, 2 * tn), lambda n, m, k: (0, n)),
                ],
                out_specs=pl.BlockSpec((tm, tn), lambda n, m, k: (m, n)),
                scratch_shapes=[pltpu.VMEM((tm, 2 * tn), jnp.float32)],
            ),
            compiler_params=pltpu.CompilerParams(
                dimension_semantics=("parallel", "parallel", "arbitrary"),
                vmem_limit_bytes=vmem_limit,
            ),
        )(xc, w_fused, b_fused)

    out = out2d[:M, :dim_out]
    return out.reshape(*orig_shape[:-1], dim_out)


def geglu(x, params, out_dtype=None):
    """x: (..., dim_in). Returns (..., dim_out)."""
    if out_dtype is None:
        out_dtype = x.dtype  # pass jnp.bfloat16 if the consumer accepts it
    return _geglu_apply(
        x, params["w"], params["b"],
        dim_in=params["dim_in"], dim_out=params["dim_out"],
        tn=params["tn"], tk=params["tk"], out_dtype=jnp.dtype(out_dtype))


if __name__ == "__main__":
    def make_case(key, batch, seq, dim_in, dim_out):
        kx, kw, kb = jax.random.split(key, 3)
        # nn.Linear(dim_in, 2*dim_out) init: U(-1/sqrt(dim_in), 1/sqrt(dim_in)).
        bound = 1.0 / (dim_in ** 0.5)
        weight = jax.random.uniform(kw, (2 * dim_out, dim_in), jnp.float32,
                                    -bound, bound)
        bias = jax.random.uniform(kb, (2 * dim_out,), jnp.float32, -bound, bound)
        x = jax.random.normal(kx, (batch, seq, dim_in), jnp.float32)
        return x, weight, bias

    def ref_f32(x, weight, bias, dim_out):
        proj = x @ weight.T + bias
        return proj[..., :dim_out] * jax.nn.sigmoid(proj[..., dim_out:])

    # Case 1: small shapes straight from the module (batch=2, seq=8, dims=32).
    batch, seq, dim_in, dim_out = 2, 8, 32, 32
    x, w, b = make_case(jax.random.PRNGKey(0), batch, seq, dim_in, dim_out)
    params = prepare_geglu_params(w, b, dim_out)
    out = geglu(x, params)
    jax.block_until_ready(out)
    assert out.shape == (batch, seq, dim_out)
    assert jnp.allclose(out, ref_f32(x, w, b, dim_out), atol=3e-2, rtol=3e-2)

    # Case 2: ragged M and non-128-multiple dims (exercises conditional padding).
    x2, w2, b2 = make_case(jax.random.PRNGKey(1), 3, 5, 200, 70)
    params2 = prepare_geglu_params(w2, b2, 70)
    out2 = geglu(x2, params2)
    jax.block_until_ready(out2)
    assert out2.shape == (3, 5, 70)
    assert jnp.allclose(out2, ref_f32(x2, w2, b2, 70), atol=3e-2, rtol=3e-2)

    print("KERNEL_OK")
</pallas_src>

<mosaic_0001>
module attributes {stable_mosaic.version = 11 : i64} {
  func.func @_geglu_kernel(%arg0: i32, %arg1: i32, %arg2: memref<16x128xbf16, #tpu.memory_space<vmem>>, %arg3: memref<128x256xbf16, #tpu.memory_space<vmem>>, %arg4: memref<1x256xf32, #tpu.memory_space<vmem>>, %arg5: memref<16x128xf32, #tpu.memory_space<vmem>>) attributes {dimension_semantics = [#tpu.dimension_semantics<parallel>, #tpu.dimension_semantics<parallel>], iteration_bounds = array<i64: 1, 1>, scalar_prefetch = 0 : i64, scratch_operands = 0 : i64, tpu.core_type = #tpu.core_type<tc>, window_params = [{transform_indices = @transform_0, window_bounds = array<i64: 16, 128>}, {transform_indices = @transform_1, window_bounds = array<i64: 128, 256>}, {transform_indices = @transform_2, window_bounds = array<i64: 1, 256>}, {transform_indices = @transform_3, window_bounds = array<i64: 16, 128>}]} {
    %c0 = arith.constant 0 : index
    %c0_0 = arith.constant 0 : index
    %0 = vector.load %arg2[%c0, %c0_0] : memref<16x128xbf16, #tpu.memory_space<vmem>>, vector<16x128xbf16>
    %c0_1 = arith.constant 0 : index
    %c0_2 = arith.constant 0 : index
    %1 = vector.load %arg3[%c0_1, %c0_2] : memref<128x256xbf16, #tpu.memory_space<vmem>>, vector<128x256xbf16>
    %cst = arith.constant dense<0.000000e+00> : vector<16x256xf32>
    %2 = tpu.matmul %0, %1, %cst {dimension_numbers = #tpu.dot_dimension_numbers<[1], [0], [0], [1], [0, 0, 1, 1], [], []>} : vector<16x128xbf16>, vector<128x256xbf16>, vector<16x256xf32> -> vector<16x256xf32>
    %c0_3 = arith.constant 0 : index
    %c0_4 = arith.constant 0 : index
    %3 = vector.load %arg4[%c0_3, %c0_4] : memref<1x256xf32, #tpu.memory_space<vmem>>, vector<1x256xf32>
    %4 = vector.broadcast %3 : vector<1x256xf32> to vector<16x256xf32>
    %5 = arith.addf %2, %4 : vector<16x256xf32>
    %6 = vector.extract_strided_slice %5 {offsets = [0, 0], sizes = [16, 128], strides = [1, 1]} : vector<16x256xf32> to vector<16x128xf32>
    %7 = vector.extract_strided_slice %5 {offsets = [0, 128], sizes = [16, 128], strides = [1, 1]} : vector<16x256xf32> to vector<16x128xf32>
    %8 = arith.negf %7 : vector<16x128xf32>
    %9 = math.exp %8 : vector<16x128xf32>
    %cst_5 = arith.constant 1.000000e+00 : f32
    %10 = vector.broadcast %cst_5 : f32 to vector<16x128xf32>
    %11 = arith.addf %10, %9 : vector<16x128xf32>
    %12 = arith.divf %10, %11 : vector<16x128xf32>
    %13 = arith.mulf %6, %12 : vector<16x128xf32>
    %c0_6 = arith.constant 0 : index
    %c0_7 = arith.constant 0 : index
    %14 = vector.load %arg5[%c0_6, %c0_7] : memref<16x128xf32, #tpu.memory_space<vmem>>, vector<16x128xf32>
    tpu.vector_store %arg5[%c0_6, %c0_7], %13 {strides = array<i32>} : memref<16x128xf32, #tpu.memory_space<vmem>>, vector<16x128xf32>,
    return
  }
  func.func @transform_0(%arg0: i32, %arg1: i32) -> (i32, i32) {
    %c0_i32 = arith.constant 0 : i32
    %c0_i32_0 = arith.constant 0 : i32
    return %arg1, %c0_i32 : i32, i32
  }
  func.func @transform_1(%arg0: i32, %arg1: i32) -> (i32, i32) {
    %c0_i32 = arith.constant 0 : i32
    %c0_i32_0 = arith.constant 0 : i32
    return %c0_i32, %arg0 : i32, i32
  }
  func.func @transform_2(%arg0: i32, %arg1: i32) -> (i32, i32) {
    %c0_i32 = arith.constant 0 : i32
    %c0_i32_0 = arith.constant 0 : i32
    return %c0_i32, %arg0 : i32, i32
  }
  func.func @transform_3(%arg0: i32, %arg1: i32) -> (i32, i32) {
    %c0_i32 = arith.constant 0 : i32
    return %arg1, %arg0 : i32, i32
  }
}

</mosaic_0001>

<llo_original>
// kernel: _geglu_apply.1
$region0: #{_geglu_apply.1}
  #allocation0 [shape = 'u32[]', space=smem, size = 0x4, offset = 0x4, fixed_abs, tag = 'smem constant byte address 0x4 - core index']
  #allocation1 [shape = 'u32[144,128]{1,0:T(1,128)}', space=vmem, size = 0x12000, scoped, tag = 'internal scratch']
  %s0 = inlined_call_operand.vmem [shape: bf16[16,128], index: 0, kind: input, shape index: {}]
  %s1 = inlined_call_operand.hbm [shape: bf16[128,256], index: 1, kind: input, shape index: {}]
  %s2 = inlined_call_operand.vmem [shape: f32[1,256], index: 2, kind: input, shape index: {}]
  %s3 = inlined_call_operand.vmem [shape: f32[16,128], index: 3, kind: output, shape index: {}]
  %s4 = sld [smem:[#allocation0]]
  $region26: #{_geglu_apply.1} parent=0
    _
  %s6 = ssub.s32 1, %s4
  %s7 = scalar_select 0, %s6, %s4
  $region1: #{_geglu_apply.1} parent=0
    #allocation2 [shape = 'u8[65536]{0}', space=vmem, size = 0x10000, scoped, tag = 'input window, operand 1, single buffered']
    #allocation3 [shape = 's32[1]{0}', space=sflag, size = 0x4, scoped, tag = 'scoped memory for _geglu_apply.1']
    %8 = vsyncpa [#allocation3], 0
    // Predicated region
    $region2: #{_geglu_apply.1} parent=1 // pred_check
      _
    $region3: #{_geglu_apply.1} parent=1 // pred_check_branch
      %10 = sbr.rel (0) target = $region5
    $region4: #{_geglu_apply.1} parent=1 // pred_region
      _
    $region5: #{_geglu_apply.1} parent=1 // pred_fallthru
      _
    // Predicated region
    $region6: #{_geglu_apply.1} parent=1 // pred_check
      _
    $region7: #{_geglu_apply.1} parent=1 // pred_check_branch
      %12 = sbr.rel (0) target = $region9
    $region8: #{_geglu_apply.1} parent=1 // pred_region
      %s14 = ssub.s32 2048, 2048
      %15 = vsyncadd [#allocation3], %s14
      %s16 = sshll.u32 [#allocation2], 4
      %s17 = int_to_ptr.vmem [resolvable:$true] %s16
      %22 = dma.hbm_to_vmem [thread:$0]  %s1, 2048, %s17, [#allocation3], 128, 128, 8
    $region9: #{_geglu_apply.1} parent=1 // pred_fallthru
      _
    // Predicated region
    $region10: #{_geglu_apply.1} parent=1 // pred_check
      _
    $region11: #{_geglu_apply.1} parent=1 // pred_check_branch
      %24 = sbr.rel (0) target = $region13
    $region12: #{_geglu_apply.1} parent=1 // pred_region
      _
    $region13: #{_geglu_apply.1} parent=1 // pred_fallthru
      _
    // Predicated region
    $region14: #{_geglu_apply.1} parent=1 // pred_check
      _
    $region15: #{_geglu_apply.1} parent=1 // pred_check_branch
      %26 = sbr.rel (0) target = $region17
    $region16: #{_geglu_apply.1} parent=1 // pred_region
      %27 = dma.done [#allocation3], 2048
    $region17: #{_geglu_apply.1} parent=1 // pred_fallthru
      _
    %v29 = vld [vmem:[%s0] sm:$0xf]
    %v30 = vld [vmem:[%s0 + $0x4] sm:$0xf]
    %v31 = vld [vmem:[#allocation2] sm:$0xff]
    %v32 = vld [vmem:[#allocation2 + $0x8] sm:$0xff]
    %v33 = vld [vmem:[#allocation2 + $0x10] sm:$0xff]
    %v34 = vld [vmem:[#allocation2 + $0x18] sm:$0xff]
    %v35 = vld [vmem:[#allocation2 + $0x20] sm:$0xff]
    %v36 = vld [vmem:[#allocation2 + $0x28] sm:$0xff]
    %v37 = vld [vmem:[#allocation2 + $0x30] sm:$0xff]
    %v38 = vld [vmem:[#allocation2 + $0x38] sm:$0xff]
    %v39 = vld [vmem:[#allocation2 + $0x40] sm:$0xff]
    %v40 = vld [vmem:[#allocation2 + $0x48] sm:$0xff]
    %v41 = vld [vmem:[#allocation2 + $0x50] sm:$0xff]
    %v42 = vld [vmem:[#allocation2 + $0x58] sm:$0xff]
    %v43 = vld [vmem:[#allocation2 + $0x60] sm:$0xff]
    %v44 = vld [vmem:[#allocation2 + $0x68] sm:$0xff]
    %v45 = vld [vmem:[#allocation2 + $0x70] sm:$0xff]
    %v46 = vld [vmem:[#allocation2 + $0x78] sm:$0xff]
    %v47 = vld [vmem:[%s2] sm:$0x3]
    %v49 = vlaneseq
    %v50 = vshrl.u32 %v49, 7
    %v51 = vsub.s32 0, %v50
    %v52 = vrot.slane %v47, %v51
    %v53 = vlaneseq
    %v54 = vshrl.u32 %v53, 7
    %v55 = vsub.s32 1, %v54
    %v56 = vrot.slane %v47, %v55
    %v61 = vunpack.c.l.b16 %v29
    %v62 = vunpack.c.l.b16 %v30
    %v63 = vpack.c.b16 %v62, %v61
    %v81 = vunpack.c.l.b16 %v31
    %v82 = vunpack.c.h.b16 %v31
    %v83 = vunpack.c.l.b16 %v32
    %v84 = vunpack.c.h.b16 %v32
    %v85 = vunpack.c.l.b16 %v33
    %v86 = vunpack.c.h.b16 %v33
    %v87 = vunpack.c.l.b16 %v34
    %v88 = vunpack.c.h.b16 %v34
    %v89 = vunpack.c.l.b16 %v35
    %v90 = vunpack.c.h.b16 %v35
    %v91 = vunpack.c.l.b16 %v36
    %v92 = vunpack.c.h.b16 %v36
    %v93 = vunpack.c.l.b16 %v37
    %v94 = vunpack.c.h.b16 %v37
    %v95 = vunpack.c.l.b16 %v38
    %v96 = vunpack.c.h.b16 %v38
    %v97 = vunpack.c.l.b16 %v39
    %v98 = vunpack.c.h.b16 %v39
    %v99 = vunpack.c.l.b16 %v40
    %v100 = vunpack.c.h.b16 %v40
    %v101 = vunpack.c.l.b16 %v41
    %v102 = vunpack.c.h.b16 %v41
    %v103 = vunpack.c.l.b16 %v42
    %v104 = vunpack.c.h.b16 %v42
    %v105 = vunpack.c.l.b16 %v43
    %v106 = vunpack.c.h.b16 %v43
    %v107 = vunpack.c.l.b16 %v44
    %v108 = vunpack.c.h.b16 %v44
    %v109 = vunpack.c.l.b16 %v45
    %v110 = vunpack.c.h.b16 %v45
    %v111 = vunpack.c.l.b16 %v46
    %v112 = vunpack.c.h.b16 %v46
    %v113 = vpack.c.b16 %v83, %v81
    %v114 = vpack.c.b16 %v84, %v82
    %v115 = vpack.c.b16 %v87, %v85
    %v116 = vpack.c.b16 %v88, %v86
    %v117 = vpack.c.b16 %v91, %v89
    %v118 = vpack.c.b16 %v92, %v90
    %v119 = vpack.c.b16 %v95, %v93
    %v120 = vpack.c.b16 %v96, %v94
    %v121 = vpack.c.b16 %v99, %v97
    %v122 = vpack.c.b16 %v100, %v98
    %v123 = vpack.c.b16 %v103, %v101
    %v124 = vpack.c.b16 %v104, %v102
    %v125 = vpack.c.b16 %v107, %v105
    %v126 = vpack.c.b16 %v108, %v106
    %v127 = vpack.c.b16 %v111, %v109
    %v128 = vpack.c.b16 %v112, %v110
    %145 = vmatprep.subr.bf16.mxu0 %v114
    %146 = vmatpush1.bf16.msra.mxu0 %v113
    %147 = vmatprep.subr.bf16.mxu0 %v116
    %148 = vmatpush1.bf16.msra.mxu0 %v115
    %149 = vmatprep.subr.bf16.mxu0 %v118
    %150 = vmatpush1.bf16.msra.mxu0 %v117
    %151 = vmatprep.subr.bf16.mxu0 %v120
    %152 = vmatpush1.bf16.msra.mxu0 %v119
    %153 = vmatprep.subr.bf16.mxu0 %v122
    %154 = vmatpush1.bf16.msra.mxu0 %v121
    %155 = vmatprep.subr.bf16.mxu0 %v124
    %156 = vmatpush1.bf16.msra.mxu0 %v123
    %157 = vmatprep.subr.bf16.mxu0 %v126
    %158 = vmatpush1.bf16.msra.mxu0 %v125
    %159 = vmatprep.subr.bf16.mxu0 %v128
    %160 = vmatpush1.bf16.msra.mxu0 %v127
    %161 = vmatprep.subr.bf16.mxu0 0
    %162 = vmatpush1.bf16.msra.mxu0 0
    %163 = vmatprep.subr.bf16.mxu0 0
    %164 = vmatpush1.bf16.msra.mxu0 0
    %165 = vmatprep.subr.bf16.mxu0 0
    %166 = vmatpush1.bf16.msra.mxu0 0
    %167 = vmatprep.subr.bf16.mxu0 0
    %168 = vmatpush1.bf16.msra.mxu0 0
    %169 = vmatprep.subr.bf16.mxu0 0
    %170 = vmatpush1.bf16.msra.mxu0 0
    %171 = vmatprep.subr.bf16.mxu0 0
    %172 = vmatpush1.bf16.msra.mxu0 0
    %173 = vmatprep.subr.bf16.mxu0 0
    %174 = vmatpush1.bf16.msra.mxu0 0
    %175 = vmatprep.subr.bf16.mxu0 0
    %176 = vmatpush1.bf16.msra.mxu0 0
    %177 = vmatprep.mubr.bf16.mxu0 0
    %178 = vmatmul.mubr.bf16.gmra.mrb[0].mxu0 %v63
    %v179 = vpop.f32.mrb[0].mxu0
    %v180 = vadd.f32 %v52, %v179
    %v181 = vpop.f32.mrb[0].mxu0
    %v182 = vadd.f32 %v56, %v181
    %v183 = vpop.f32.mrb[0].mxu0
    %v184 = vadd.f32 %v52, %v183
    %v185 = vpop.f32.mrb[0].mxu0
    %v186 = vadd.f32 %v56, %v185
    %187 = vdwg.mxu0
    %v188 = vxor.u32 %v182, 2147483648
    %v189 = vxor.u32 %v186, 2147483648
    %v190 = vmul.f32 %v188, 1.442695
    %v191 = vpow.pop %v190
    %v192 = vmul.f32 %v189, 1.442695
    %v193 = vpow.pop %v192
    %v194 = vadd.f32 %v191, 1.0
    %v195 = vadd.f32 %v193, 1.0
    %v196 = vrcp.pop %v194
    %v197 = vmul.f32 1.0, %v196
    %v198 = vrcp.pop %v195
    %v199 = vmul.f32 1.0, %v198
    %v200 = vmul.f32 %v180, %v197
    %v201 = vmul.f32 %v184, %v199
    %202 = vst [vmem:[%s3] sm:$0xff] %v200
    %203 = vst [vmem:[%s3 + $0x8] sm:$0xff] %v201
    // Predicated region
    $region18: #{_geglu_apply.1} parent=1 // pred_check
      _
    $region19: #{_geglu_apply.1} parent=1 // pred_check_branch
      %205 = sbr.rel (0) target = $region21
    $region20: #{_geglu_apply.1} parent=1 // pred_region
      _
    $region21: #{_geglu_apply.1} parent=1 // pred_fallthru
      _
    // Predicated region
    $region22: #{_geglu_apply.1} parent=1 // pred_check
      _
    $region23: #{_geglu_apply.1} parent=1 // pred_check_branch
      %207 = sbr.rel (0) target = $region25
    $region24: #{_geglu_apply.1} parent=1 // pred_region
      _
    $region25: #{_geglu_apply.1} parent=1 // pred_fallthru
      _
    %208 = vsyncpa [#allocation3], 1

</llo_original>
